<compile_context>
chip_gen: v7x
topology: tpu7x:2x2x1
jax: 0.10.0
libtpu: 0.0.40
codegen_flags: <defaults>
</compile_context>

<pallas_src>
import functools
import math

import jax
import jax.numpy as jnp
import numpy as np
from jax import lax
from jax.experimental import pallas as pl
from jax.experimental.pallas import tpu as pltpu


# ------------------------- small helpers -------------------------

def _round_up(x, m):
    return ((x + m - 1) // m) * m


def _pick_row_tile(total, preferred=256):
    """Largest tile <= preferred that divides `total` and is a multiple of 8,
    else the full extent (keeps block shapes legal w.r.t. the (8,128) rule)."""
    if total <= preferred:
        return total
    t = preferred
    while t >= 8:
        if total % t == 0:
            return t
        t //= 2
    return total


def _pick_k_tile(total, preferred=512):
    """Tile the contraction dim only when it splits into clean multiples."""
    if total > preferred and total % preferred == 0:
        return preferred
    return total


# ------------------------- linear kernels -------------------------

def _linear_kernel_noacc(x_ref, w_ref, b_ref, o_ref):
    # Full contraction dim resident: one MXU pass per row tile, weight fetched once
    # (constant block index), bias added in f32, bf16 store.
    o_ref[...] = (jnp.dot(x_ref[...], w_ref[...],
                          preferred_element_type=jnp.float32)
                  + b_ref[...]).astype(o_ref.dtype)


def _linear_kernel_acc(x_ref, w_ref, b_ref, o_ref, acc_ref):
    # K-tiled fallback (large Cin): f32 VMEM accumulator across the "arbitrary" axis.
    @pl.when(pl.program_id(1) == 0)
    def _():
        acc_ref[...] = jnp.zeros_like(acc_ref)

    acc_ref[...] += jnp.dot(x_ref[...], w_ref[...],
                            preferred_element_type=jnp.float32)

    @pl.when(pl.program_id(1) == pl.num_programs(1) - 1)
    def _():
        o_ref[...] = (acc_ref[...] + b_ref[...]).astype(o_ref.dtype)


def linear(x2d, w, b, *, row_block=256, k_block=512,
           weight_vmem_budget=16 * 1024 * 1024):
    """y = x2d @ w + b.  x2d/w bf16, b f32, output bf16.
    Rows are pipelined ("parallel"). If the whole bf16 weight fits the VMEM budget
    (double-buffer counted) the contraction is done in one pass and the weight block
    index is constant, so it is DMA'd from HBM once."""
    T, Cin = x2d.shape
    Cout = w.shape[1]
    tm = _pick_row_tile(T, row_block)

    w_bytes = Cin * Cout * jnp.dtype(w.dtype).itemsize
    full_k = (2 * w_bytes) <= weight_vmem_budget
    params = pltpu.CompilerParams(
        dimension_semantics=("parallel",) if full_k else ("parallel", "arbitrary"),
        vmem_limit_bytes=64 * 1024 * 1024)

    if full_k:
        return pl.pallas_call(
            _linear_kernel_noacc,
            out_shape=jax.ShapeDtypeStruct((T, Cout), jnp.bfloat16),
            grid=(T // tm,),
            in_specs=[
                pl.BlockSpec((tm, Cin), lambda i: (i, 0)),
                pl.BlockSpec((Cin, Cout), lambda i: (0, 0)),
                pl.BlockSpec((1, Cout), lambda i: (0, 0)),
            ],
            out_specs=pl.BlockSpec((tm, Cout), lambda i: (i, 0)),
            compiler_params=params,
        )(x2d, w, b)

    tk = _pick_k_tile(Cin, k_block)
    return pl.pallas_call(
        _linear_kernel_acc,
        out_shape=jax.ShapeDtypeStruct((T, Cout), jnp.bfloat16),
        grid=(T // tm, Cin // tk),
        in_specs=[
            pl.BlockSpec((tm, tk), lambda i, k: (i, k)),
            pl.BlockSpec((tk, Cout), lambda i, k: (k, 0)),
            pl.BlockSpec((1, Cout), lambda i, k: (0, 0)),
        ],
        out_specs=pl.BlockSpec((tm, Cout), lambda i, k: (i, 0)),
        scratch_shapes=[pltpu.VMEM((tm, Cout), jnp.float32)],
        compiler_params=params,
    )(x2d, w, b)


# ------------------------- fused attention + out-projection kernel -------------------------

def _attn_out_kernel(q_ref, kv_ref, wo_ref, bo_ref, o_ref, *,
                     num_heads, head_dim_p, hidden_p):
    # q_ref : (1, tn, hidden_p)    bf16, scale already folded into wq/bq
    # kv_ref: (1, M, 2*hidden_p)   bf16, [k | v] fused, head-dim padded to 128-multiple
    # wo_ref: (hidden_p, cout_p)   bf16 out-projection weight (resident across the grid)
    # bo_ref: (1, cout_p)          f32
    # o_ref : (1, tn, cout_p)      lane-dense f32 output block
    q = q_ref[0]
    kv = kv_ref[0]

    head_outs = []
    for h in range(num_heads):                      # static unroll (small H)
        lo = h * head_dim_p                         # lane-aligned (128-multiple) slices
        qh = q[:, lo:lo + head_dim_p]                                   # (tn, Dp)
        kh = kv[:, lo:lo + head_dim_p]                                  # (M, Dp)
        vh = kv[:, hidden_p + lo:hidden_p + lo + head_dim_p]            # (M, Dp)
        # q @ k^T as a contraction over Dp -- no materialized transpose.
        s = lax.dot_general(qh, kh, (((1,), (1,)), ((), ())),
                            preferred_element_type=jnp.float32)         # (tn, M) f32
        m = jnp.max(s, axis=-1, keepdims=True)
        p = jnp.exp(s - m)
        l = jnp.sum(p, axis=-1, keepdims=True)
        o_h = jnp.dot(p.astype(kv.dtype), vh,
                      preferred_element_type=jnp.float32)               # (tn, Dp) f32
        head_outs.append(o_h * pl.reciprocal(l))    # normalize AFTER PV: tn*Dp muls

    attn = jnp.concatenate(head_outs, axis=-1)      # (tn, hidden_p) f32, lane-dense
    out = jnp.dot(attn.astype(wo_ref.dtype), wo_ref[...],
                  preferred_element_type=jnp.float32) + bo_ref[...]
    o_ref[0] = out.astype(o_ref.dtype)


def attention_out_proj(q, kv, wo_p, bo_p, *, num_heads, head_dim_p, row_block=256):
    """q: (B, N, hidden_p) bf16; kv: (B, M, 2*hidden_p) bf16; returns the padded
    (B, N, cout_p) f32 result of out_proj(multi-head attention). Non-causal, no mask,
    no dropout (the module's default path)."""
    B, N, hidden_p = q.shape
    M = kv.shape[1]
    cout_p = wo_p.shape[1]
    tn = _pick_row_tile(N, row_block)
    kernel = functools.partial(
        _attn_out_kernel, num_heads=num_heads,
        head_dim_p=head_dim_p, hidden_p=hidden_p)
    return pl.pallas_call(
        kernel,
        out_shape=jax.ShapeDtypeStruct((B, N, cout_p), jnp.float32),
        grid=(B, N // tn),
        in_specs=[
            pl.BlockSpec((1, tn, hidden_p), lambda b, n: (b, n, 0)),
            pl.BlockSpec((1, M, 2 * hidden_p), lambda b, n: (b, 0, 0)),
            pl.BlockSpec((hidden_p, cout_p), lambda b, n: (0, 0)),
            pl.BlockSpec((1, cout_p), lambda b, n: (0, 0)),
        ],
        out_specs=pl.BlockSpec((1, tn, cout_p), lambda b, n: (b, n, 0)),
        compiler_params=pltpu.CompilerParams(
            dimension_semantics=("parallel", "parallel"),
            vmem_limit_bytes=64 * 1024 * 1024),
    )(q, kv, wo_p, bo_p)


# ------------------------- parameter preparation (one-time host-side fold) -------------------------

def init_cross_attention_params(key, hidden_dim, num_heads,
                                input_dim=None, context_dim=None, output_dim=None):
    input_dim = input_dim if input_dim is not None else hidden_dim
    context_dim = context_dim if context_dim is not None else hidden_dim
    output_dim = output_dim if output_dim is not None else hidden_dim
    assert hidden_dim % num_heads == 0
    ks = jax.random.split(key, 8)

    def w(k, cin, cout):
        return jax.random.normal(k, (cin, cout), jnp.float32) * 0.02

    def b(k, cout):
        return jax.random.normal(k, (1, cout), jnp.float32) * 0.01

    return {
        "wq": w(ks[0], input_dim, hidden_dim),   "bq": b(ks[1], hidden_dim),
        "wk": w(ks[2], context_dim, hidden_dim), "bk": b(ks[3], hidden_dim),
        "wv": w(ks[4], context_dim, hidden_dim), "bv": b(ks[5], hidden_dim),
        "wo": w(ks[6], hidden_dim, output_dim),  "bo": b(ks[7], output_dim),
    }


def prepare_cross_attention_params(params, num_heads):
    """Pad head_dim / output_dim up to lane multiples, fold 1/sqrt(head_dim) into wq/bq,
    fuse wk|wv, and cast matmul weights to bf16 (biases stay f32). Zero padding keeps the
    math exactly equivalent; padded output columns are sliced off in the wrapper."""
    hidden = params["wq"].shape[1]
    D = hidden // num_heads
    Dp = _round_up(D, 128)                       # lane-aligned per-head width
    hidden_p = num_heads * Dp
    output_dim = params["wo"].shape[1]
    cout_p = _round_up(output_dim, 128)
    scale = 1.0 / math.sqrt(D)

    def pad_headwise(w, b, s=1.0):
        cin = w.shape[0]
        wp = jnp.pad((w * s).reshape(cin, num_heads, D),
                     ((0, 0), (0, 0), (0, Dp - D))).reshape(cin, hidden_p)
        bp = jnp.pad((b * s).reshape(1, num_heads, D),
                     ((0, 0), (0, 0), (0, Dp - D))).reshape(1, hidden_p)
        return wp, bp

    wq_p, bq_p = pad_headwise(params["wq"], params["bq"], scale)   # scale folded here
    wk_p, bk_p = pad_headwise(params["wk"], params["bk"])
    wv_p, bv_p = pad_headwise(params["wv"], params["bv"])
    wkv_p = jnp.concatenate([wk_p, wv_p], axis=1)                  # (Cc, 2*hidden_p)
    bkv_p = jnp.concatenate([bk_p, bv_p], axis=1)

    wo_p = jnp.pad(params["wo"].reshape(num_heads, D, output_dim),
                   ((0, 0), (0, Dp - D), (0, cout_p - output_dim))
                   ).reshape(hidden_p, cout_p)
    bo_p = jnp.pad(params["bo"], ((0, 0), (0, cout_p - output_dim)))

    return {
        "wq": wq_p.astype(jnp.bfloat16), "bq": bq_p.astype(jnp.float32),
        "wkv": wkv_p.astype(jnp.bfloat16), "bkv": bkv_p.astype(jnp.float32),
        "wo": wo_p.astype(jnp.bfloat16), "bo": bo_p.astype(jnp.float32),
        "num_heads": num_heads, "head_dim_p": Dp,
        "hidden_p": hidden_p, "output_dim": output_dim,
    }


def cross_attention_forward(x, context, prepared):
    """Equivalent of CrossAttention.forward(x, context) with mask_q=mask_kv=None, dropout=0."""
    B, N, C = x.shape
    M, Cc = context.shape[1], context.shape[2]
    hidden_p = prepared["hidden_p"]

    xb = x.astype(jnp.bfloat16)
    cb = context.astype(jnp.bfloat16)

    q = linear(xb.reshape(B * N, C), prepared["wq"], prepared["bq"]
               ).reshape(B, N, hidden_p)
    kv = linear(cb.reshape(B * M, Cc), prepared["wkv"], prepared["bkv"]
                ).reshape(B, M, 2 * hidden_p)

    out_p = attention_out_proj(q, kv, prepared["wo"], prepared["bo"],
                               num_heads=prepared["num_heads"],
                               head_dim_p=prepared["head_dim_p"])
    return out_p[..., :prepared["output_dim"]]


# ------------------------- Pure-JAX reference -------------------------

def _reference(x, context, params, num_heads):
    B, N, _ = x.shape
    M = context.shape[1]
    hidden = params["wq"].shape[1]
    D = hidden // num_heads
    q = (x @ params["wq"] + params["bq"]).reshape(B, N, num_heads, D)
    k = (context @ params["wk"] + params["bk"]).reshape(B, M, num_heads, D)
    v = (context @ params["wv"] + params["bv"]).reshape(B, M, num_heads, D)
    s = jnp.einsum("bnhd,bmhd->bhnm", q, k) / math.sqrt(D)
    w = jax.nn.softmax(s, axis=-1)
    o = jnp.einsum("bhnm,bmhd->bnhd", w, v).reshape(B, N, hidden)
    return o @ params["wo"] + params["bo"]


# ------------------------- Main -------------------------

if __name__ == "__main__":
    key = jax.random.PRNGKey(0)
    k_params, k_x, k_ctx = jax.random.split(key, 3)

    # Small, module-consistent shapes.
    B, N, M = 2, 8, 8
    hidden_dim, num_heads = 32, 4
    input_dim, context_dim, output_dim = 32, 16, 32

    params = init_cross_attention_params(
        k_params, hidden_dim, num_heads,
        input_dim=input_dim, context_dim=context_dim, output_dim=output_dim)
    prepared = prepare_cross_attention_params(params, num_heads)

    x = jax.random.normal(k_x, (B, N, input_dim), jnp.float32)
    context = jax.random.normal(k_ctx, (B, M, context_dim), jnp.float32)

    out = cross_attention_forward(x, context, prepared)
    out = jax.block_until_ready(out)

    ref = _reference(x, context, params, num_heads)
    # bf16 matmul operands (f32 accumulation) vs the pure-f32 reference.
    np.testing.assert_allclose(np.asarray(out, dtype=np.float32),
                               np.asarray(ref), rtol=2e-2, atol=2e-3)

    assert out.shape == (B, N, output_dim)
    print("KERNEL_OK")
</pallas_src>

<mosaic_0001>
module attributes {stable_mosaic.version = 11 : i64} {
  func.func @_linear_kernel_noacc(%arg0: i32, %arg1: memref<16x32xbf16, #tpu.memory_space<vmem>>, %arg2: memref<32x512xbf16, #tpu.memory_space<vmem>>, %arg3: memref<1x512xf32, #tpu.memory_space<vmem>>, %arg4: memref<16x512xbf16, #tpu.memory_space<vmem>>) attributes {dimension_semantics = [#tpu.dimension_semantics<parallel>], iteration_bounds = array<i64: 1>, scalar_prefetch = 0 : i64, scratch_operands = 0 : i64, tpu.core_type = #tpu.core_type<tc>, window_params = [{transform_indices = @transform_0, window_bounds = array<i64: 16, 32>}, {pipeline_mode = #tpu.pipeline_mode<synchronous>, transform_indices = @transform_1, window_bounds = array<i64: 32, 512>}, {pipeline_mode = #tpu.pipeline_mode<synchronous>, transform_indices = @transform_2, window_bounds = array<i64: 1, 512>}, {transform_indices = @transform_3, window_bounds = array<i64: 16, 512>}]} {
    %c0 = arith.constant 0 : index
    %c0_0 = arith.constant 0 : index
    %0 = vector.load %arg1[%c0, %c0_0] : memref<16x32xbf16, #tpu.memory_space<vmem>>, vector<16x32xbf16>
    %c0_1 = arith.constant 0 : index
    %c0_2 = arith.constant 0 : index
    %1 = vector.load %arg2[%c0_1, %c0_2] : memref<32x512xbf16, #tpu.memory_space<vmem>>, vector<32x512xbf16>
    %cst = arith.constant dense<0.000000e+00> : vector<16x512xf32>
    %2 = tpu.matmul %0, %1, %cst {dimension_numbers = #tpu.dot_dimension_numbers<[1], [0], [0], [1], [0, 0, 1, 1], [], []>} : vector<16x32xbf16>, vector<32x512xbf16>, vector<16x512xf32> -> vector<16x512xf32>
    %c0_3 = arith.constant 0 : index
    %c0_4 = arith.constant 0 : index
    %3 = vector.load %arg3[%c0_3, %c0_4] : memref<1x512xf32, #tpu.memory_space<vmem>>, vector<1x512xf32>
    %4 = vector.broadcast %3 : vector<1x512xf32> to vector<16x512xf32>
    %5 = arith.addf %2, %4 : vector<16x512xf32>
    %6 = arith.truncf %5 : vector<16x512xf32> to vector<16x512xbf16>
    %c0_5 = arith.constant 0 : index
    %c0_6 = arith.constant 0 : index
    %7 = vector.load %arg4[%c0_5, %c0_6] : memref<16x512xbf16, #tpu.memory_space<vmem>>, vector<16x512xbf16>
    tpu.vector_store %arg4[%c0_5, %c0_6], %6 {strides = array<i32>} : memref<16x512xbf16, #tpu.memory_space<vmem>>, vector<16x512xbf16>,
    return
  }
  func.func @transform_0(%arg0: i32) -> (i32, i32) {
    %c0_i32 = arith.constant 0 : i32
    %c0_i32_0 = arith.constant 0 : i32
    return %arg0, %c0_i32 : i32, i32
  }
  func.func @transform_1(%arg0: i32) -> (i32, i32) {
    %c0_i32 = arith.constant 0 : i32
    %c0_i32_0 = arith.constant 0 : i32
    %c0_i32_1 = arith.constant 0 : i32
    return %c0_i32, %c0_i32_0 : i32, i32
  }
  func.func @transform_2(%arg0: i32) -> (i32, i32) {
    %c0_i32 = arith.constant 0 : i32
    %c0_i32_0 = arith.constant 0 : i32
    %c0_i32_1 = arith.constant 0 : i32
    return %c0_i32, %c0_i32_0 : i32, i32
  }
  func.func @transform_3(%arg0: i32) -> (i32, i32) {
    %c0_i32 = arith.constant 0 : i32
    %c0_i32_0 = arith.constant 0 : i32
    return %arg0, %c0_i32 : i32, i32
  }
}

</mosaic_0001>

<llo_original>
// kernel: tpu_custom_call.1
$region0: #{tpu_custom_call.1}
  #allocation0 [shape = 'u32[]', space=smem, size = 0x4, offset = 0x4, fixed_abs, tag = 'smem constant byte address 0x4 - core index']
  #allocation1 [shape = 'u32[144,128]{1,0:T(1,128)}', space=vmem, size = 0x12000, scoped, tag = 'internal scratch']
  %s0 = inlined_call_operand.hbm [shape: bf16[16,32], index: 0, kind: input, shape index: {}]
  %s1 = inlined_call_operand.hbm [shape: bf16[32,512], index: 1, kind: input, shape index: {}]
  %s2 = inlined_call_operand.hbm [shape: f32[1,512], index: 2, kind: input, shape index: {}]
  %s3 = inlined_call_operand.hbm [shape: bf16[16,512], index: 3, kind: output, shape index: {}]
  %s4 = sld [smem:[#allocation0]]
  $region34: #{tpu_custom_call.1} parent=0
    _
  %s6 = ssub.s32 1, %s4
  %s7 = scalar_select 0, %s6, %s4
  $region1: #{tpu_custom_call.1} parent=0
    #allocation2 [shape = 'u8[4096]{0}', space=vmem, size = 0x1000, scoped, tag = 'input window, operand 0, single buffered']
    #allocation3 [shape = 's32[1]{0}', space=sflag, size = 0x4, scoped, tag = 'scoped memory for tpu_custom_call.1']
    #allocation4 [shape = 's32[1]{0}', space=sflag, size = 0x4, scoped, tag = 'scoped memory for tpu_custom_call.1']
    #allocation5 [shape = 'u8[32768]{0}', space=vmem, size = 0x8000, scoped, tag = 'input window, operand 1, single buffered']
    #allocation6 [shape = 's32[1]{0}', space=sflag, size = 0x4, scoped, tag = 'scoped memory for tpu_custom_call.1']
    #allocation7 [shape = 'u8[2048]{0}', space=vmem, size = 0x800, scoped, tag = 'input window, operand 2, single buffered']
    #allocation8 [shape = 'u8[16384]{0}', space=vmem, size = 0x4000, scoped, tag = 'output window, operand 0, single buffered']
    %8 = vsyncpa [#allocation3], 0
    %9 = vsyncpa [#allocation6], 0
    %10 = vsyncpa [#allocation4], 0
    // Predicated region
    $region2: #{tpu_custom_call.1} parent=1 // pred_check
      _
    $region3: #{tpu_custom_call.1} parent=1 // pred_check_branch
      %12 = sbr.rel (0) target = $region5
    $region4: #{tpu_custom_call.1} parent=1 // pred_region
      %s14 = ssub.s32 128, 128
      %15 = vsyncadd [#allocation3], %s14
      %s16 = sshll.u32 [#allocation2], 4
      %s17 = int_to_ptr.vmem [resolvable:$true] %s16
      %22 = dma.hbm_to_vmem [thread:$0]  %s0, 128, %s17, [#allocation3], 64, 64, 4
    $region5: #{tpu_custom_call.1} parent=1 // pred_fallthru
      _
    // Predicated region
    $region6: #{tpu_custom_call.1} parent=1 // pred_check
      _
    $region7: #{tpu_custom_call.1} parent=1 // pred_check_branch
      %24 = sbr.rel (0) target = $region9
    $region8: #{tpu_custom_call.1} parent=1 // pred_region
      %s26 = ssub.s32 1024, 1024
      %27 = vsyncadd [#allocation6], %s26
      %s28 = sshll.u32 [#allocation5], 4
      %s29 = int_to_ptr.vmem [resolvable:$true] %s28
      %34 = dma.hbm_to_vmem [thread:$0]  %s1, 1024, %s29, [#allocation6], 256, 256, 16
    $region9: #{tpu_custom_call.1} parent=1 // pred_fallthru
      _
    // Predicated region
    $region10: #{tpu_custom_call.1} parent=1 // pred_check
      _
    $region11: #{tpu_custom_call.1} parent=1 // pred_check_branch
      %36 = sbr.rel (0) target = $region13
    $region12: #{tpu_custom_call.1} parent=1 // pred_region
      %s38 = ssub.s32 64, 64
      %39 = vsyncadd [#allocation6], %s38
      %s41 = sshll.u32 [#allocation7], 4
      %s42 = int_to_ptr.vmem [resolvable:$true] %s41
      %44 = dma.hbm_to_vmem [thread:$0]  %s2, 64, %s42, [#allocation6]
    $region13: #{tpu_custom_call.1} parent=1 // pred_fallthru
      _
    // Predicated region
    $region14: #{tpu_custom_call.1} parent=1 // pred_check
      _
    $region15: #{tpu_custom_call.1} parent=1 // pred_check_branch
      %46 = sbr.rel (0) target = $region17
    $region16: #{tpu_custom_call.1} parent=1 // pred_region
      %47 = dma.done [#allocation3], 128
    $region17: #{tpu_custom_call.1} parent=1 // pred_fallthru
      _
    // Predicated region
    $region18: #{tpu_custom_call.1} parent=1 // pred_check
      _
    $region19: #{tpu_custom_call.1} parent=1 // pred_check_branch
      %49 = sbr.rel (0) target = $region21
    $region20: #{tpu_custom_call.1} parent=1 // pred_region
      %50 = dma.done [#allocation6], 1024
    $region21: #{tpu_custom_call.1} parent=1 // pred_fallthru
      _
    // Predicated region
    $region22: #{tpu_custom_call.1} parent=1 // pred_check
      _
    $region23: #{tpu_custom_call.1} parent=1 // pred_check_branch
      %52 = sbr.rel (0) target = $region25
    $region24: #{tpu_custom_call.1} parent=1 // pred_region
      %53 = dma.done [#allocation6], 64
    $region25: #{tpu_custom_call.1} parent=1 // pred_fallthru
      _
    %v55 = vld [vmem:[#allocation2] sm:$0xf]
    %v56 = vld [vmem:[#allocation2 + $0x4] sm:$0xf]
    %v57 = vld [vmem:[#allocation5] sm:$0xff]
    %v58 = vld [vmem:[#allocation5 + $0x8] sm:$0xff]
    %v59 = vld [vmem:[#allocation5 + $0x10] sm:$0xff]
    %v60 = vld [vmem:[#allocation5 + $0x18] sm:$0xff]
    %v61 = vld [vmem:[#allocation5 + $0x20] sm:$0xff]
    %v62 = vld [vmem:[#allocation5 + $0x28] sm:$0xff]
    %v63 = vld [vmem:[#allocation5 + $0x30] sm:$0xff]
    %v64 = vld [vmem:[#allocation5 + $0x38] sm:$0xff]
    %v65 = vld [vmem:[#allocation7] sm:$0xf]
    %v67 = vlaneseq
    %v68 = vshrl.u32 %v67, 7
    %v69 = vsub.s32 0, %v68
    %v70 = vrot.slane %v65, %v69
    %v71 = vlaneseq
    %v72 = vshrl.u32 %v71, 7
    %v73 = vsub.s32 1, %v72
    %v74 = vrot.slane %v65, %v73
    %v75 = vlaneseq
    %v76 = vshrl.u32 %v75, 7
    %v77 = vsub.s32 2, %v76
    %v78 = vrot.slane %v65, %v77
    %v79 = vlaneseq
    %v80 = vshrl.u32 %v79, 7
    %v81 = vsub.s32 3, %v80
    %v82 = vrot.slane %v65, %v81
    %v89 = vunpack.c.l.b16 %v55
    %v90 = vunpack.c.l.b16 %v56
    %v91 = vpack.c.b16 %v90, %v89
    %v100 = vunpack.c.l.b16 %v57
    %v101 = vunpack.c.h.b16 %v57
    %v102 = vunpack.c.l.b16 %v58
    %v103 = vunpack.c.h.b16 %v58
    %v104 = vunpack.c.l.b16 %v59
    %v105 = vunpack.c.h.b16 %v59
    %v106 = vunpack.c.l.b16 %v60
    %v107 = vunpack.c.h.b16 %v60
    %v108 = vunpack.c.l.b16 %v61
    %v109 = vunpack.c.h.b16 %v61
    %v110 = vunpack.c.l.b16 %v62
    %v111 = vunpack.c.h.b16 %v62
    %v112 = vunpack.c.l.b16 %v63
    %v113 = vunpack.c.h.b16 %v63
    %v114 = vunpack.c.l.b16 %v64
    %v115 = vunpack.c.h.b16 %v64
    %v116 = vpack.c.b16 %v104, %v100
    %v117 = vpack.c.b16 %v105, %v101
    %v118 = vpack.c.b16 %v106, %v102
    %v119 = vpack.c.b16 %v107, %v103
    %v120 = vpack.c.b16 %v112, %v108
    %v121 = vpack.c.b16 %v113, %v109
    %v122 = vpack.c.b16 %v114, %v110
    %v123 = vpack.c.b16 %v115, %v111
    %vm132 = vcmask 261120
    %v134 = vsel %vm132, %v91, 0
    %136 = vmatprep.subr.bf16.mxu0 %v117
    %137 = vmatpush1.bf16.msra.mxu0 %v116
    %138 = vmatprep.subr.bf16.mxu0 %v121
    %139 = vmatpush1.bf16.msra.mxu0 %v120
    %140 = vmatprep.subr.bf16.mxu0 0
    %141 = vmatpush1.bf16.msra.mxu0 0
    %142 = vmatprep.subr.bf16.mxu0 0
    %143 = vmatpush1.bf16.msra.mxu0 0
    %144 = vmatprep.subr.bf16.mxu0 0
    %145 = vmatpush1.bf16.msra.mxu0 0
    %146 = vmatprep.subr.bf16.mxu0 0
    %147 = vmatpush1.bf16.msra.mxu0 0
    %148 = vmatprep.subr.bf16.mxu0 0
    %149 = vmatpush1.bf16.msra.mxu0 0
    %150 = vmatprep.subr.bf16.mxu0 0
    %151 = vmatpush1.bf16.msra.mxu0 0
    %152 = vmatprep.subr.bf16.mxu0 0
    %153 = vmatpush1.bf16.msra.mxu0 0
    %154 = vmatprep.subr.bf16.mxu0 0
    %155 = vmatpush1.bf16.msra.mxu0 0
    %156 = vmatprep.subr.bf16.mxu0 0
    %157 = vmatpush1.bf16.msra.mxu0 0
    %158 = vmatprep.subr.bf16.mxu0 0
    %159 = vmatpush1.bf16.msra.mxu0 0
    %160 = vmatprep.subr.bf16.mxu0 0
    %161 = vmatpush1.bf16.msra.mxu0 0
    %162 = vmatprep.subr.bf16.mxu0 0
    %163 = vmatpush1.bf16.msra.mxu0 0
    %164 = vmatprep.subr.bf16.mxu0 0
    %165 = vmatpush1.bf16.msra.mxu0 0
    %166 = vmatprep.subr.bf16.mxu0 0
    %167 = vmatpush1.bf16.msra.mxu0 0
    %168 = vmatprep.mubr.bf16.mxu0 0
    %169 = vmatmul.mubr.bf16.gmra.mrb[0].mxu0 %v134
    %v170 = vpop.f32.mrb[0].mxu0
    %v171 = vadd.f32 %v70, %v170
    %v172 = vpop.f32.mrb[0].mxu0
    %v173 = vadd.f32 %v74, %v172
    %v174 = vpop.f32.mrb[0].mxu0
    %v175 = vadd.f32 %v70, %v174
    %v176 = vpop.f32.mrb[0].mxu0
    %v177 = vadd.f32 %v74, %v176
    %178 = vdwg.mxu0
    %179 = vmatprep.subr.bf16.mxu0 %v119
    %180 = vmatpush1.bf16.msra.mxu0 %v118
    %181 = vmatprep.subr.bf16.mxu0 %v123
    %182 = vmatpush1.bf16.msra.mxu0 %v122
    %183 = vmatprep.subr.bf16.mxu0 0
    %184 = vmatpush1.bf16.msra.mxu0 0
    %185 = vmatprep.subr.bf16.mxu0 0
    %186 = vmatpush1.bf16.msra.mxu0 0
    %187 = vmatprep.subr.bf16.mxu0 0
    %188 = vmatpush1.bf16.msra.mxu0 0
    %189 = vmatprep.subr.bf16.mxu0 0
    %190 = vmatpush1.bf16.msra.mxu0 0
    %191 = vmatprep.subr.bf16.mxu0 0
    %192 = vmatpush1.bf16.msra.mxu0 0
    %193 = vmatprep.subr.bf16.mxu0 0
    %194 = vmatpush1.bf16.msra.mxu0 0
    %195 = vmatprep.subr.bf16.mxu0 0
    %196 = vmatpush1.bf16.msra.mxu0 0
    %197 = vmatprep.subr.bf16.mxu0 0
    %198 = vmatpush1.bf16.msra.mxu0 0
    %199 = vmatprep.subr.bf16.mxu0 0
    %200 = vmatpush1.bf16.msra.mxu0 0
    %201 = vmatprep.subr.bf16.mxu0 0
    %202 = vmatpush1.bf16.msra.mxu0 0
    %203 = vmatprep.subr.bf16.mxu0 0
    %204 = vmatpush1.bf16.msra.mxu0 0
    %205 = vmatprep.subr.bf16.mxu0 0
    %206 = vmatpush1.bf16.msra.mxu0 0
    %207 = vmatprep.subr.bf16.mxu0 0
    %208 = vmatpush1.bf16.msra.mxu0 0
    %209 = vmatprep.subr.bf16.mxu0 0
    %210 = vmatpush1.bf16.msra.mxu0 0
    %211 = vmatprep.mubr.bf16.mxu0 0
    %212 = vmatmul.mubr.bf16.gmra.mrb[0].mxu0 %v134
    %v213 = vpop.f32.mrb[0].mxu0
    %v214 = vadd.f32 %v78, %v213
    %v215 = vpop.f32.mrb[0].mxu0
    %v216 = vadd.f32 %v82, %v215
    %v217 = vpop.f32.mrb[0].mxu0
    %v218 = vadd.f32 %v78, %v217
    %v219 = vpop.f32.mrb[0].mxu0
    %v220 = vadd.f32 %v82, %v219
    %221 = vdwg.mxu0
    %v222 = vpack.c.bf16 %v175, %v171
    %v223 = vpack.c.bf16 %v177, %v173
    %v224 = vpack.c.bf16 %v218, %v214
    %v225 = vpack.c.bf16 %v220, %v216
    %v230 = vunpack.c.l.b16 %v222
    %v231 = vunpack.c.l.b16 %v223
    %v232 = vunpack.c.l.b16 %v224
    %v233 = vunpack.c.l.b16 %v225
    %v234 = vunpack.c.h.b16 %v222
    %v235 = vunpack.c.h.b16 %v223
    %v236 = vunpack.c.h.b16 %v224
    %v237 = vunpack.c.h.b16 %v225
    %v238 = vpack.c.b16 %v231, %v230
    %v239 = vpack.c.b16 %v233, %v232
    %v240 = vpack.c.b16 %v235, %v234
    %v241 = vpack.c.b16 %v237, %v236
    %246 = vst [vmem:[#allocation8] sm:$0xff] %v238
    %247 = vst [vmem:[#allocation8 + $0x8] sm:$0xff] %v239
    %248 = vst [vmem:[#allocation8 + $0x10] sm:$0xff] %v240
    %249 = vst [vmem:[#allocation8 + $0x18] sm:$0xff] %v241
    // Predicated region
    $region26: #{tpu_custom_call.1} parent=1 // pred_check
      _
    $region27: #{tpu_custom_call.1} parent=1 // pred_check_branch
      %251 = sbr.rel (0) target = $region29
    $region28: #{tpu_custom_call.1} parent=1 // pred_region
      %s253 = ssub.s32 512, 512
      %254 = vsyncadd [#allocation4], %s253
      %s255 = sshll.u32 [#allocation8], 4
      %s256 = int_to_ptr.vmem [resolvable:$true] %s255
      %261 = dma.vmem_to_hbm [thread:$0]  %s256, 512, %s3, [#allocation4], 256, 256, 16
    $region29: #{tpu_custom_call.1} parent=1 // pred_fallthru
      _
    // Predicated region
    $region30: #{tpu_custom_call.1} parent=1 // pred_check
      _
    $region31: #{tpu_custom_call.1} parent=1 // pred_check_branch
      %263 = sbr.rel (0) target = $region33
    $region32: #{tpu_custom_call.1} parent=1 // pred_region
      %264 = dma.done [#allocation4], 512
    $region33: #{tpu_custom_call.1} parent=1 // pred_fallthru
      _
    %265 = vsyncpa [#allocation3], 1
    %266 = vsyncpa [#allocation6], 1
    %267 = vsyncpa [#allocation4], 1

</llo_original>
